<compile_context>
chip_gen: v7x
topology: tpu7x:2x2x1
jax: 0.10.0
libtpu: 0.0.40
codegen_flags: <defaults>
</compile_context>

<pallas_src>
import jax
import jax.numpy as jnp
from jax.experimental import pallas as pl
from jax.experimental.pallas import tpu as pltpu

EMB_DIM = 512    # InceptionResnetV1.last_linear.out_features
CONV_CH = 128    # synthetic stem output channels (lane-dense: multiple of 128)
IMG_C = 3
IMG_HW = 16
BATCH = 2


def _vmem_specs(n):
    return [pl.BlockSpec(memory_space=pltpu.MemorySpace.VMEM) for _ in range(n)]


# ----------------------------------------------------------------------------
# Fused kernel: backbone stem + embedding + (pre-folded) regressor head.
#   patches : (B*P, K)   im2col 3x3 patches, K = 9*Cin
#   pm      : (B, B*P)   per-image averaging matrix (global avg pool as matmul)
#   wc, bc  : (K, C), (1, C)        conv weights/bias
#   wl, bl  : (C, 512), (1, 512)    embedding linear
#   wh, bh  : (512, 1), (1, 1)      folded LastRegressor head (purely affine)
# ----------------------------------------------------------------------------
def fused_kernel(patches_ref, pm_ref, wc_ref, bc_ref, wl_ref, bl_ref,
                 wh_ref, bh_ref, out_ref):
    # conv3x3 as a single flat 2D matmul, bias + ReLU       -> (B*P, C)
    conv = jnp.dot(patches_ref[...], wc_ref[...],
                   preferred_element_type=jnp.float32)
    conv = jnp.maximum(conv + bc_ref[...], 0.0)

    # global average pool per image via block-averaging matmul -> (B, C)
    pooled = jnp.dot(pm_ref[...], conv, preferred_element_type=jnp.float32)

    # embedding linear + L2 normalize (facenet-style)          -> (B, 512)
    emb = jnp.dot(pooled, wl_ref[...],
                  preferred_element_type=jnp.float32) + bl_ref[...]
    # 1/max(||emb||, 1e-12) == rsqrt(max(sum_sq, 1e-24)); rsqrt runs on the EUP.
    inv_norm = jax.lax.rsqrt(
        jnp.maximum(jnp.sum(emb * emb, axis=1, keepdims=True), 1e-24))
    emb = emb * inv_norm

    # pre-folded regressor head: single affine map 512 -> 1
    out_ref[...] = jnp.dot(emb, wh_ref[...],
                           preferred_element_type=jnp.float32) + bh_ref[...]


# ----------------------------------------------------------------------------
# Glue: parameter init, head weight folding, im2col, wrapper
# ----------------------------------------------------------------------------
def _linear_init(key, fan_in, fan_out):
    kw, kb = jax.random.split(key)
    bound = 1.0 / (fan_in ** 0.5)
    w = jax.random.uniform(kw, (fan_in, fan_out), jnp.float32, -bound, bound)
    b = jax.random.uniform(kb, (1, fan_out), jnp.float32, -bound, bound)
    return w, b


def _avg_pool_matrix(n):
    # (n, n//2): out[:, j] = 0.5 * (in[:, 2j] + in[:, 2j+1])  == nn.AvgPool1d(2)
    return jnp.repeat(jnp.eye(n // 2, dtype=jnp.float32), 2, axis=0) * 0.5


def init_params(key):
    ks = jax.random.split(key, 8)
    p = {}
    p["wc"], p["bc"] = _linear_init(ks[0], 9 * IMG_C, CONV_CH)   # conv3x3 as matmul
    p["wl"], p["bl"] = _linear_init(ks[1], CONV_CH, EMB_DIM)     # stem -> 512 embedding
    p["w1"], p["b1"] = _linear_init(ks[2], 512, 512)             # LastRegressor layers
    p["w2"], p["b2"] = _linear_init(ks[3], 256, 256)
    p["w3"], p["b3"] = _linear_init(ks[4], 256, 128)
    p["w4"], p["b4"] = _linear_init(ks[5], 64, 4)
    p["w5"], p["b5"] = _linear_init(ks[6], 4, 1)
    p["p1"] = _avg_pool_matrix(512)                              # AvgPool1d(2) 512->256
    p["p2"] = _avg_pool_matrix(128)                              # AvgPool1d(2) 128->64
    return p


def fold_params(p):
    """Pre-fold the purely-linear LastRegressor (Dropout = identity in eval)
    into a single (512, 1) weight and (1, 1) bias.  Exact same math as the
    layer-by-layer head."""
    w = p["w1"] @ p["p1"]                       # Linear(512,512) -> AvgPool1d(2)
    b = p["b1"] @ p["p1"]
    w = w @ p["w2"]; b = b @ p["w2"] + p["b2"]  # Linear(256,256)
    w = w @ p["w3"]; b = b @ p["w3"] + p["b3"]  # Linear(256,128)
    w = w @ p["p2"]; b = b @ p["p2"]            # AvgPool1d(2)
    w = w @ p["w4"]; b = b @ p["w4"] + p["b4"]  # Linear(64,4)
    w = w @ p["w5"]; b = b @ p["w5"] + p["b5"]  # Linear(4,1)
    return {"wc": p["wc"], "bc": p["bc"],
            "wl": p["wl"], "bl": p["bl"],
            "wh": w, "bh": b}


def im2col_3x3(x_nhwc):
    B, H, W, C = x_nhwc.shape
    xp = jnp.pad(x_nhwc, ((0, 0), (1, 1), (1, 1), (0, 0)))
    cols = []
    for di in range(3):
        for dj in range(3):
            cols.append(xp[:, di:di + H, dj:dj + W, :])
    patches = jnp.concatenate(cols, axis=-1)          # (B, H, W, 9*C)
    return patches.reshape(B * H * W, 9 * C)          # flat 2D for the MXU


@jax.jit
def regressor_forward(image_nchw, fused):
    # NCHW (PyTorch convention) -> NHWC, then flat im2col patches.
    x = jnp.transpose(image_nchw, (0, 2, 3, 1)).astype(jnp.float32)
    B = x.shape[0]
    P = x.shape[1] * x.shape[2]
    patches = im2col_3x3(x)                           # (B*P, 27)

    # Per-image block-averaging matrix for the global average pool.
    rows = jax.lax.broadcasted_iota(jnp.int32, (B, B * P), 1) // P
    imgs = jax.lax.broadcasted_iota(jnp.int32, (B, B * P), 0)
    pm = jnp.where(rows == imgs, 1.0 / P, 0.0).astype(jnp.float32)

    # TODO(synk): for large batches add a grid over B with
    # dimension_semantics=("parallel",) so v7x's second TensorCore is used.
    out = pl.pallas_call(
        fused_kernel,
        out_shape=jax.ShapeDtypeStruct((B, 1), jnp.float32),
        in_specs=_vmem_specs(8),
        out_specs=pl.BlockSpec(memory_space=pltpu.MemorySpace.VMEM),
    )(patches, pm,
      fused["wc"], fused["bc"],
      fused["wl"], fused["bl"],
      fused["wh"], fused["bh"])
    return out


if __name__ == "__main__":
    key = jax.random.PRNGKey(0)
    k_img, k_par = jax.random.split(key)
    image = jax.random.normal(k_img, (BATCH, IMG_C, IMG_HW, IMG_HW), jnp.float32)

    params = init_params(k_par)
    fused = fold_params(params)          # fold the linear head ONCE, outside jit
    fused = jax.tree_util.tree_map(jax.block_until_ready, fused)

    out = regressor_forward(image, fused)
    out = jax.block_until_ready(out)
    assert out.shape == (BATCH, 1), out.shape
    print("KERNEL_OK")
</pallas_src>

<mosaic_0001>
module attributes {stable_mosaic.version = 11 : i64} {
  func.func @fused_kernel(%arg0: memref<512x27xf32, #tpu.memory_space<vmem>>, %arg1: memref<2x512xf32, #tpu.memory_space<vmem>>, %arg2: memref<27x128xf32, #tpu.memory_space<vmem>>, %arg3: memref<1x128xf32, #tpu.memory_space<vmem>>, %arg4: memref<128x512xf32, #tpu.memory_space<vmem>>, %arg5: memref<1x512xf32, #tpu.memory_space<vmem>>, %arg6: memref<512x1xf32, #tpu.memory_space<vmem>>, %arg7: memref<1x1xf32, #tpu.memory_space<vmem>>, %arg8: memref<2x1xf32, #tpu.memory_space<vmem>>) attributes {dimension_semantics = [], scalar_prefetch = 0 : i64, scratch_operands = 0 : i64, tpu.core_type = #tpu.core_type<tc>} {
    %c0 = arith.constant 0 : index
    %c0_0 = arith.constant 0 : index
    %0 = vector.load %arg0[%c0, %c0_0] : memref<512x27xf32, #tpu.memory_space<vmem>>, vector<512x27xf32>
    %c0_1 = arith.constant 0 : index
    %c0_2 = arith.constant 0 : index
    %1 = vector.load %arg2[%c0_1, %c0_2] : memref<27x128xf32, #tpu.memory_space<vmem>>, vector<27x128xf32>
    %cst = arith.constant dense<0.000000e+00> : vector<512x128xf32>
    %2 = tpu.matmul %0, %1, %cst {dimension_numbers = #tpu.dot_dimension_numbers<[1], [0], [0], [1], [0, 0, 1, 1], [], []>} : vector<512x27xf32>, vector<27x128xf32>, vector<512x128xf32> -> vector<512x128xf32>
    %c0_3 = arith.constant 0 : index
    %c0_4 = arith.constant 0 : index
    %3 = vector.load %arg3[%c0_3, %c0_4] : memref<1x128xf32, #tpu.memory_space<vmem>>, vector<1x128xf32>
    %4 = vector.broadcast %3 : vector<1x128xf32> to vector<512x128xf32>
    %5 = arith.addf %2, %4 : vector<512x128xf32>
    %cst_5 = arith.constant 0.000000e+00 : f32
    %6 = vector.broadcast %cst_5 : f32 to vector<512x128xf32>
    %7 = arith.maximumf %5, %6 : vector<512x128xf32>
    %c0_6 = arith.constant 0 : index
    %c0_7 = arith.constant 0 : index
    %8 = vector.load %arg1[%c0_6, %c0_7] : memref<2x512xf32, #tpu.memory_space<vmem>>, vector<2x512xf32>
    %cst_8 = arith.constant dense<0.000000e+00> : vector<2x128xf32>
    %9 = tpu.matmul %8, %7, %cst_8 {dimension_numbers = #tpu.dot_dimension_numbers<[1], [0], [0], [1], [0, 0, 1, 1], [], []>} : vector<2x512xf32>, vector<512x128xf32>, vector<2x128xf32> -> vector<2x128xf32>
    %c0_9 = arith.constant 0 : index
    %c0_10 = arith.constant 0 : index
    %10 = vector.load %arg4[%c0_9, %c0_10] : memref<128x512xf32, #tpu.memory_space<vmem>>, vector<128x512xf32>
    %cst_11 = arith.constant dense<0.000000e+00> : vector<2x512xf32>
    %11 = tpu.matmul %9, %10, %cst_11 {dimension_numbers = #tpu.dot_dimension_numbers<[1], [0], [0], [1], [0, 0, 1, 1], [], []>} : vector<2x128xf32>, vector<128x512xf32>, vector<2x512xf32> -> vector<2x512xf32>
    %c0_12 = arith.constant 0 : index
    %c0_13 = arith.constant 0 : index
    %12 = vector.load %arg5[%c0_12, %c0_13] : memref<1x512xf32, #tpu.memory_space<vmem>>, vector<1x512xf32>
    %13 = vector.broadcast %12 : vector<1x512xf32> to vector<2x512xf32>
    %14 = arith.addf %11, %13 : vector<2x512xf32>
    %15 = arith.mulf %14, %14 : vector<2x512xf32>
    %cst_14 = arith.constant dense<0.000000e+00> : vector<2xf32>
    %16 = vector.multi_reduction <add>, %15, %cst_14 [1] : vector<2x512xf32> to vector<2xf32>
    %17 = vector.shape_cast %16 : vector<2xf32> to vector<2x1xf32>
    %cst_15 = arith.constant 1.000000e-24 : f32
    %18 = vector.broadcast %cst_15 : f32 to vector<2x1xf32>
    %19 = arith.maximumf %17, %18 : vector<2x1xf32>
    %20 = math.rsqrt %19 : vector<2x1xf32>
    %21 = vector.broadcast %20 : vector<2x1xf32> to vector<2x512xf32>
    %22 = arith.mulf %14, %21 : vector<2x512xf32>
    %c0_16 = arith.constant 0 : index
    %c0_17 = arith.constant 0 : index
    %23 = vector.load %arg6[%c0_16, %c0_17] : memref<512x1xf32, #tpu.memory_space<vmem>>, vector<512x1xf32>
    %cst_18 = arith.constant dense<0.000000e+00> : vector<2x1xf32>
    %24 = tpu.matmul %22, %23, %cst_18 {dimension_numbers = #tpu.dot_dimension_numbers<[1], [0], [0], [1], [0, 0, 1, 1], [], []>} : vector<2x512xf32>, vector<512x1xf32>, vector<2x1xf32> -> vector<2x1xf32>
    %c0_19 = arith.constant 0 : index
    %c0_20 = arith.constant 0 : index
    %25 = vector.load %arg7[%c0_19, %c0_20] : memref<1x1xf32, #tpu.memory_space<vmem>>, vector<1x1xf32>
    %26 = vector.broadcast %25 : vector<1x1xf32> to vector<2x1xf32>
    %27 = arith.addf %24, %26 : vector<2x1xf32>
    %c0_21 = arith.constant 0 : index
    %c0_22 = arith.constant 0 : index
    %28 = vector.load %arg8[%c0_21, %c0_22] : memref<2x1xf32, #tpu.memory_space<vmem>>, vector<2x1xf32>
    tpu.vector_store %arg8[%c0_21, %c0_22], %27 {strides = array<i32>} : memref<2x1xf32, #tpu.memory_space<vmem>>, vector<2x1xf32>,
    return
  }
}

</mosaic_0001>

<llo_original>
// kernel: regressor_forward.1
$region0: #{regressor_forward.1}
  #allocation0 [shape = 'u32[]', space=smem, size = 0x4, offset = 0x4, fixed_abs, tag = 'smem constant byte address 0x4 - core index']
  #allocation1 [shape = 'u32[144,128]{1,0:T(1,128)}', space=vmem, size = 0x12000, scoped, tag = 'internal scratch']
  #allocation2 [shape = 'f32[1,1]{1,0:T(1,128)S(1)}', space=vmem, size = 0x200, scoped, tag = 'scoped memory for regressor_forward.1']
  %s0 = inlined_call_operand.vmem [shape: f32[512,27], index: 0, kind: input, shape index: {}]
  %s1 = inlined_call_operand.vmem [shape: f32[2,512], index: 1, kind: input, shape index: {}]
  %s2 = inlined_call_operand.vmem [shape: f32[27,128], index: 2, kind: input, shape index: {}]
  %s3 = inlined_call_operand.vmem [shape: f32[1,128], index: 3, kind: input, shape index: {}]
  %s4 = inlined_call_operand.vmem [shape: f32[128,512], index: 4, kind: input, shape index: {}]
  %s5 = inlined_call_operand.vmem [shape: f32[1,512], index: 5, kind: input, shape index: {}]
  %s6 = inlined_call_operand.vmem [shape: f32[512,1], index: 6, kind: input, shape index: {}]
  %s7 = inlined_call_operand.<no memory space> [shape: f32[1,1], index: 7, kind: input, shape index: {}]
  %s8 = inlined_call_operand.vmem [shape: f32[2,1], index: 8, kind: output, shape index: {}]
  %s9 = sld [smem:[#allocation0]]
  $region42: #{regressor_forward.1} parent=0
    _
  %s11 = ssub.s32 1, %s9
  %s12 = scalar_select 0, %s11, %s9
  %v13 = vstv %s7
  %14 = vst [vmem:[#allocation2] sm:$0x1] %v13
  // Predicated region
  $region2: #{regressor_forward.1} parent=0 // pred_check
    _
  $region3: #{regressor_forward.1} parent=0 // pred_check_branch
    %16 = sbr.rel (0) target = $region5
  $region4: #{regressor_forward.1} parent=0 // pred_region
    _
  $region5: #{regressor_forward.1} parent=0 // pred_fallthru
    _
  // Predicated region
  $region6: #{regressor_forward.1} parent=0 // pred_check
    _
  $region7: #{regressor_forward.1} parent=0 // pred_check_branch
    %18 = sbr.rel (0) target = $region9
  $region8: #{regressor_forward.1} parent=0 // pred_region
    _
  $region9: #{regressor_forward.1} parent=0 // pred_fallthru
    _
  // Predicated region
  $region10: #{regressor_forward.1} parent=0 // pred_check
    _
  $region11: #{regressor_forward.1} parent=0 // pred_check_branch
    %20 = sbr.rel (0) target = $region13
  $region12: #{regressor_forward.1} parent=0 // pred_region
    _
  $region13: #{regressor_forward.1} parent=0 // pred_fallthru
    _
  // Predicated region
  $region14: #{regressor_forward.1} parent=0 // pred_check
    _
  $region15: #{regressor_forward.1} parent=0 // pred_check_branch
    %22 = sbr.rel (0) target = $region17
  $region16: #{regressor_forward.1} parent=0 // pred_region
    _
  $region17: #{regressor_forward.1} parent=0 // pred_fallthru
    _
  // Predicated region
  $region18: #{regressor_forward.1} parent=0 // pred_check
    _
  $region19: #{regressor_forward.1} parent=0 // pred_check_branch
    %24 = sbr.rel (0) target = $region21
  $region20: #{regressor_forward.1} parent=0 // pred_region
    _
  $region21: #{regressor_forward.1} parent=0 // pred_fallthru
    _
  // Predicated region
  $region22: #{regressor_forward.1} parent=0 // pred_check
    _
  $region23: #{regressor_forward.1} parent=0 // pred_check_branch
    %26 = sbr.rel (0) target = $region25
  $region24: #{regressor_forward.1} parent=0 // pred_region
    _
  $region25: #{regressor_forward.1} parent=0 // pred_fallthru
    _
  // Predicated region
  $region26: #{regressor_forward.1} parent=0 // pred_check
    _
  $region27: #{regressor_forward.1} parent=0 // pred_check_branch
    %28 = sbr.rel (0) target = $region29
  $region28: #{regressor_forward.1} parent=0 // pred_region
    _
  $region29: #{regressor_forward.1} parent=0 // pred_fallthru
    _
  // Predicated region
  $region30: #{regressor_forward.1} parent=0 // pred_check
    _
  $region31: #{regressor_forward.1} parent=0 // pred_check_branch
    %30 = sbr.rel (0) target = $region33
  $region32: #{regressor_forward.1} parent=0 // pred_region
    _
  $region33: #{regressor_forward.1} parent=0 // pred_fallthru
    _
  %v31 = vld [vmem:[%s0] sm:$0xff]
  %v32 = vld [vmem:[%s0 + $0x8] sm:$0xff]
  %v33 = vld [vmem:[%s0 + $0x10] sm:$0xff]
  %v34 = vld [vmem:[%s0 + $0x18] sm:$0xff]
  %v35 = vld [vmem:[%s0 + $0x20] sm:$0xff]
  %v36 = vld [vmem:[%s0 + $0x28] sm:$0xff]
  %v37 = vld [vmem:[%s0 + $0x30] sm:$0xff]
  %v38 = vld [vmem:[%s0 + $0x38] sm:$0xff]
  %v39 = vld [vmem:[%s0 + $0x40] sm:$0xff]
  %v40 = vld [vmem:[%s0 + $0x48] sm:$0xff]
  %v41 = vld [vmem:[%s0 + $0x50] sm:$0xff]
  %v42 = vld [vmem:[%s0 + $0x58] sm:$0xff]
  %v43 = vld [vmem:[%s0 + $0x60] sm:$0xff]
  %v44 = vld [vmem:[%s0 + $0x68] sm:$0xff]
  %v45 = vld [vmem:[%s0 + $0x70] sm:$0xff]
  %v46 = vld [vmem:[%s0 + $0x78] sm:$0xff]
  %v47 = vld [vmem:[%s0 + $0x80] sm:$0xff]
  %v48 = vld [vmem:[%s0 + $0x88] sm:$0xff]
  %v49 = vld [vmem:[%s0 + $0x90] sm:$0xff]
  %v50 = vld [vmem:[%s0 + $0x98] sm:$0xff]
  %v51 = vld [vmem:[%s0 + $0xa0] sm:$0xff]
  %v52 = vld [vmem:[%s0 + $0xa8] sm:$0xff]
  %v53 = vld [vmem:[%s0 + $0xb0] sm:$0xff]
  %v54 = vld [vmem:[%s0 + $0xb8] sm:$0xff]
  %v55 = vld [vmem:[%s0 + $0xc0] sm:$0xff]
  %v56 = vld [vmem:[%s0 + $0xc8] sm:$0xff]
  %v57 = vld [vmem:[%s0 + $0xd0] sm:$0xff]
  %v58 = vld [vmem:[%s0 + $0xd8] sm:$0xff]
  %v59 = vld [vmem:[%s0 + $0xe0] sm:$0xff]
  %v60 = vld [vmem:[%s0 + $0xe8] sm:$0xff]
  %v61 = vld [vmem:[%s0 + $0xf0] sm:$0xff]
  %v62 = vld [vmem:[%s0 + $0xf8] sm:$0xff]
  %v63 = vld [vmem:[%s0 + $0x100] sm:$0xff]
  %v64 = vld [vmem:[%s0 + $0x108] sm:$0xff]
  %v65 = vld [vmem:[%s0 + $0x110] sm:$0xff]
  %v66 = vld [vmem:[%s0 + $0x118] sm:$0xff]
  %v67 = vld [vmem:[%s0 + $0x120] sm:$0xff]
  %v68 = vld [vmem:[%s0 + $0x128] sm:$0xff]
  %v69 = vld [vmem:[%s0 + $0x130] sm:$0xff]
  %v70 = vld [vmem:[%s0 + $0x138] sm:$0xff]
  %v71 = vld [vmem:[%s0 + $0x140] sm:$0xff]
  %v72 = vld [vmem:[%s0 + $0x148] sm:$0xff]
  %v73 = vld [vmem:[%s0 + $0x150] sm:$0xff]
  %v74 = vld [vmem:[%s0 + $0x158] sm:$0xff]
  %v75 = vld [vmem:[%s0 + $0x160] sm:$0xff]
  %v76 = vld [vmem:[%s0 + $0x168] sm:$0xff]
  %v77 = vld [vmem:[%s0 + $0x170] sm:$0xff]
  %v78 = vld [vmem:[%s0 + $0x178] sm:$0xff]
  %v79 = vld [vmem:[%s0 + $0x180] sm:$0xff]
  %v80 = vld [vmem:[%s0 + $0x188] sm:$0xff]
  %v81 = vld [vmem:[%s0 + $0x190] sm:$0xff]
  %v82 = vld [vmem:[%s0 + $0x198] sm:$0xff]
  %v83 = vld [vmem:[%s0 + $0x1a0] sm:$0xff]
  %v84 = vld [vmem:[%s0 + $0x1a8] sm:$0xff]
  %v85 = vld [vmem:[%s0 + $0x1b0] sm:$0xff]
  %v86 = vld [vmem:[%s0 + $0x1b8] sm:$0xff]
  %v87 = vld [vmem:[%s0 + $0x1c0] sm:$0xff]
  %v88 = vld [vmem:[%s0 + $0x1c8] sm:$0xff]
  %v89 = vld [vmem:[%s0 + $0x1d0] sm:$0xff]
  %v90 = vld [vmem:[%s0 + $0x1d8] sm:$0xff]
  %v91 = vld [vmem:[%s0 + $0x1e0] sm:$0xff]
  %v92 = vld [vmem:[%s0 + $0x1e8] sm:$0xff]
  %v93 = vld [vmem:[%s0 + $0x1f0] sm:$0xff]
  %v94 = vld [vmem:[%s0 + $0x1f8] sm:$0xff]
  %v95 = vld [vmem:[%s2] sm:$0xff]
  %v96 = vld [vmem:[%s2 + $0x8] sm:$0xff]
  %v97 = vld [vmem:[%s2 + $0x10] sm:$0xff]
  %v98 = vld [vmem:[%s2 + $0x18] sm:$0x7]
  %v99 = vld [vmem:[%s3] sm:$0x1]
  %v101 = vlaneseq
  %v102 = vshrl.u32 %v101, 7
  %v103 = vsub.s32 0, %v102
  %v104 = vrot.slane %v99, %v103
  %vm106 = vcmask 220160
  %v108 = vsel %vm106, %v31, 0
  %v111 = vsel %vm106, %v32, 0
  %v114 = vsel %vm106, %v33, 0
  %v117 = vsel %vm106, %v34, 0
  %v120 = vsel %vm106, %v35, 0
  %v123 = vsel %vm106, %v36, 0
  %v126 = vsel %vm106, %v37, 0
  %v129 = vsel %vm106, %v38, 0
  %v132 = vsel %vm106, %v39, 0
  %v135 = vsel %vm106, %v40, 0
  %v138 = vsel %vm106, %v41, 0
  %v141 = vsel %vm106, %v42, 0
  %v144 = vsel %vm106, %v43, 0
  %v147 = vsel %vm106, %v44, 0
  %v150 = vsel %vm106, %v45, 0
  %v153 = vsel %vm106, %v46, 0
  %v156 = vsel %vm106, %v47, 0
  %v159 = vsel %vm106, %v48, 0
  %v162 = vsel %vm106, %v49, 0
  %v165 = vsel %vm106, %v50, 0
  %v168 = vsel %vm106, %v51, 0
  %v171 = vsel %vm106, %v52, 0
  %v174 = vsel %vm106, %v53, 0
  %v177 = vsel %vm106, %v54, 0
  %v180 = vsel %vm106, %v55, 0
  %v183 = vsel %vm106, %v56, 0
  %v186 = vsel %vm106, %v57, 0
  %v189 = vsel %vm106, %v58, 0
  %v192 = vsel %vm106, %v59, 0
  %v195 = vsel %vm106, %v60, 0
  %v198 = vsel %vm106, %v61, 0
  %v201 = vsel %vm106, %v62, 0
  %v204 = vsel %vm106, %v63, 0
  %v207 = vsel %vm106, %v64, 0
  %v210 = vsel %vm106, %v65, 0
  %v213 = vsel %vm106, %v66, 0
  %v216 = vsel %vm106, %v67, 0
  %v219 = vsel %vm106, %v68, 0
  %v222 = vsel %vm106, %v69, 0
  %v225 = vsel %vm106, %v70, 0
  %v228 = vsel %vm106, %v71, 0
  %v231 = vsel %vm106, %v72, 0
  %v234 = vsel %vm106, %v73, 0
  %v237 = vsel %vm106, %v74, 0
  %v240 = vsel %vm106, %v75, 0
  %v243 = vsel %vm106, %v76, 0
  %v246 = vsel %vm106, %v77, 0
  %v249 = vsel %vm106, %v78, 0
  %v252 = vsel %vm106, %v79, 0
  %v255 = vsel %vm106, %v80, 0
  %v258 = vsel %vm106, %v81, 0
  %v261 = vsel %vm106, %v82, 0
  %v264 = vsel %vm106, %v83, 0
  %v267 = vsel %vm106, %v84, 0
  %v270 = vsel %vm106, %v85, 0
  %v273 = vsel %vm106, %v86, 0
  %v276 = vsel %vm106, %v87, 0
  %v279 = vsel %vm106, %v88, 0
  %v282 = vsel %vm106, %v89, 0
  %v285 = vsel %vm106, %v90, 0
  %v288 = vsel %vm106, %v91, 0
  %v291 = vsel %vm106, %v92, 0
  %v294 = vsel %vm106, %v93, 0
  %v297 = vsel %vm106, %v94, 0
  %vm299 = vcmask 1042432
  %v301 = vsel %vm299, %v98, 0
  %303 = vmatprep.subr.mxu0 0.0
  %304 = vmatpush1.msra.mxu0 %v95
  %305 = vmatprep.subr.mxu0 0.0
  %306 = vmatpush1.msra.mxu0 %v96
  %307 = vmatprep.subr.mxu0 0.0
  %308 = vmatpush1.msra.mxu0 %v97
  %309 = vmatprep.subr.mxu0 0.0
  %310 = vmatpush1.msra.mxu0 %v301
  %311 = vmatprep.subr.mxu0 0.0
  %312 = vmatpush1.msra.mxu0 0.0
  %313 = vmatprep.subr.mxu0 0.0
  %314 = vmatpush1.msra.mxu0 0.0
  %315 = vmatprep.subr.mxu0 0.0
  %316 = vmatpush1.msra.mxu0 0.0
  %317 = vmatprep.subr.mxu0 0.0
  %318 = vmatpush1.msra.mxu0 0.0
  %319 = vmatprep.subr.mxu0 0.0
  %320 = vmatpush1.msra.mxu0 0.0
  %321 = vmatprep.subr.mxu0 0.0
  %322 = vmatpush1.msra.mxu0 0.0
  %323 = vmatprep.subr.mxu0 0.0
  %324 = vmatpush1.msra.mxu0 0.0
  %325 = vmatprep.subr.mxu0 0.0
  %326 = vmatpush1.msra.mxu0 0.0
  %327 = vmatprep.subr.mxu0 0.0
  %328 = vmatpush1.msra.mxu0 0.0
  %329 = vmatprep.subr.mxu0 0.0
  %330 = vmatpush1.msra.mxu0 0.0
  %331 = vmatprep.subr.mxu0 0.0
  %332 = vmatpush1.msra.mxu0 0.0
  %333 = vmatprep.subr.mxu0 0.0
  %334 = vmatpush1.msra.mxu0 0.0
  %335 = vmatprep.subr.mxu0 0.0
  %336 = vmatpush1.msra.mxu0 0.0
  %337 = vmatprep.subr.mxu0 0.0
  %338 = vmatpush1.msra.mxu0 0.0
  %339 = vmatprep.subr.mxu0 0.0
  %340 = vmatpush1.msra.mxu0 0.0
  %341 = vmatprep.subr.mxu0 0.0
  %342 = vmatpush1.msra.mxu0 0.0
  %343 = vmatprep.subr.mxu0 0.0
  %344 = vmatpush1.msra.mxu0 0.0
  %345 = vmatprep.subr.mxu0 0.0
  %346 = vmatpush1.msra.mxu0 0.0
  %347 = vmatprep.subr.mxu0 0.0
  %348 = vmatpush1.msra.mxu0 0.0
  %349 = vmatprep.subr.mxu0 0.0
  %350 = vmatpush1.msra.mxu0 0.0
  %351 = vmatprep.subr.mxu0 0.0
  %352 = vmatpush1.msra.mxu0 0.0
  %353 = vmatprep.subr.mxu0 0.0
  %354 = vmatpush1.msra.mxu0 0.0
  %355 = vmatprep.subr.mxu0 0.0
  %356 = vmatpush1.msra.mxu0 0.0
  %357 = vmatprep.subr.mxu0 0.0
  %358 = vmatpush1.msra.mxu0 0.0
  %359 = vmatprep.subr.mxu0 0.0
  %360 = vmatpush1.msra.mxu0 0.0
  %361 = vmatprep.subr.mxu0 0.0
  %362 = vmatpush1.msra.mxu0 0.0
  %363 = vmatprep.subr.mxu0 0.0
  %364 = vmatpush1.msra.mxu0 0.0
  %365 = vmatprep.subr.mxu0 0.0
  %366 = vmatpush1.msra.mxu0 0.0
  %367 = vmatprep.mubr.f32.mxu0 0.0
  %368 = vmatmul.mubr.f32.gmra.mrb[0].mxu0 %v108
  %v369 = vpop.f32.mrb[0].mxu0
  %v370 = vadd.f32 %v104, %v369
  %v371 = vpop.f32.mrb[0].mxu0
  %372 = vmatprep.mubr.f32.mxu0 0.0
  %373 = vmatmul.mubr.f32.gmra.mrb[0].mxu0 %v111
  %v374 = vpop.f32.mrb[0].mxu0
  %v375 = vadd.f32 %v104, %v374
  %v376 = vpop.f32.mrb[0].mxu0
  %377 = vmatprep.mubr.f32.mxu0 0.0
  %378 = vmatmul.mubr.f32.gmra.mrb[0].mxu0 %v114
  %v379 = vpop.f32.mrb[0].mxu0
  %v380 = vadd.f32 %v104, %v379
  %v381 = vpop.f32.mrb[0].mxu0
  %382 = vmatprep.mubr.f32.mxu0 0.0
  %383 = vmatmul.mubr.f32.gmra.mrb[0].mxu0 %v117
  %v384 = vpop.f32.mrb[0].mxu0
  %v385 = vadd.f32 %v104, %v384
  %v386 = vpop.f32.mrb[0].mxu0
  %387 = vmatprep.mubr.f32.mxu0 0.0
  %388 = vmatmul.mubr.f32.gmra.mrb[0].mxu0 %v120
  %v389 = vpop.f32.mrb[0].mxu0
  %v390 = vadd.f32 %v104, %v389
  %v391 = vpop.f32.mrb[0].mxu0
  %392 = vmatprep.mubr.f32.mxu0 0.0
  %393 = vmatmul.mubr.f32.gmra.mrb[0].mxu0 %v123
  %v394 = vpop.f32.mrb[0].mxu0
  %v395 = vadd.f32 %v104, %v394
  %v396 = vpop.f32.mrb[0].mxu0
  %397 = vmatprep.mubr.f32.mxu0 0.0
  %398 = vmatmul.mubr.f32.gmra.mrb[0].mxu0 %v126
  %v399 = vpop.f32.mrb[0].mxu0
  %v400 = vadd.f32 %v104, %v399
  %v401 = vpop.f32.mrb[0].mxu0
  %402 = vmatprep.mubr.f32.mxu0 0.0
  %403 = vmatmul.mubr.f32.gmra.mrb[0].mxu0 %v129
  %v404 = vpop.f32.mrb[0].mxu0
  %v405 = vadd.f32 %v104, %v404
  %v406 = vpop.f32.mrb[0].mxu0
  %407 = vmatprep.mubr.f32.mxu0 0.0
  %408 = vmatmul.mubr.f32.gmra.mrb[0].mxu0 %v132
  %v409 = vpop.f32.mrb[0].mxu0
  %v410 = vadd.f32 %v104, %v409
  %v411 = vpop.f32.mrb[0].mxu0
  %412 = vmatprep.mubr.f32.mxu0 0.0
  %413 = vmatmul.mubr.f32.gmra.mrb[0].mxu0 %v135
  %v414 = vpop.f32.mrb[0].mxu0
  %v415 = vadd.f32 %v104, %v414
  %v416 = vpop.f32.mrb[0].mxu0
  %417 = vmatprep.mubr.f32.mxu0 0.0
  %418 = vmatmul.mubr.f32.gmra.mrb[0].mxu0 %v138
  %v419 = vpop.f32.mrb[0].mxu0
  %v420 = vadd.f32 %v104, %v419
  %v421 = vpop.f32.mrb[0].mxu0
  %422 = vmatprep.mubr.f32.mxu0 0.0
  %423 = vmatmul.mubr.f32.gmra.mrb[0].mxu0 %v141
  %v424 = vpop.f32.mrb[0].mxu0
  %v425 = vadd.f32 %v104, %v424
  %v426 = vpop.f32.mrb[0].mxu0
  %427 = vmatprep.mubr.f32.mxu0 0.0
  %428 = vmatmul.mubr.f32.gmra.mrb[0].mxu0 %v144
  %v429 = vpop.f32.mrb[0].mxu0
  %v430 = vadd.f32 %v104, %v429
  %v431 = vpop.f32.mrb[0].mxu0
  %432 = vmatprep.mubr.f32.mxu0 0.0
  %433 = vmatmul.mubr.f32.gmra.mrb[0].mxu0 %v147
  %v434 = vpop.f32.mrb[0].mxu0
  %v435 = vadd.f32 %v104, %v434
  %v436 = vpop.f32.mrb[0].mxu0
  %437 = vmatprep.mubr.f32.mxu0 0.0
  %438 = vmatmul.mubr.f32.gmra.mrb[0].mxu0 %v150
  %v439 = vpop.f32.mrb[0].mxu0
  %v440 = vadd.f32 %v104, %v439
  %v441 = vpop.f32.mrb[0].mxu0
  %442 = vmatprep.mubr.f32.mxu0 0.0
  %443 = vmatmul.mubr.f32.gmra.mrb[0].mxu0 %v153
  %v444 = vpop.f32.mrb[0].mxu0
  %v445 = vadd.f32 %v104, %v444
  %v446 = vpop.f32.mrb[0].mxu0
  %447 = vmatprep.mubr.f32.mxu0 0.0
  %448 = vmatmul.mubr.f32.gmra.mrb[0].mxu0 %v156
  %v449 = vpop.f32.mrb[0].mxu0
  %v450 = vadd.f32 %v104, %v449
  %v451 = vpop.f32.mrb[0].mxu0
  %452 = vmatprep.mubr.f32.mxu0 0.0
  %453 = vmatmul.mubr.f32.gmra.mrb[0].mxu0 %v159
  %v454 = vpop.f32.mrb[0].mxu0
  %v455 = vadd.f32 %v104, %v454
  %v456 = vpop.f32.mrb[0].mxu0
  %457 = vmatprep.mubr.f32.mxu0 0.0
  %458 = vmatmul.mubr.f32.gmra.mrb[0].mxu0 %v162
  %v459 = vpop.f32.mrb[0].mxu0
  %v460 = vadd.f32 %v104, %v459
  %v461 = vpop.f32.mrb[0].mxu0
  %462 = vmatprep.mubr.f32.mxu0 0.0
  %463 = vmatmul.mubr.f32.gmra.mrb[0].mxu0 %v165
  %v464 = vpop.f32.mrb[0].mxu0
  %v465 = vadd.f32 %v104, %v464
  %v466 = vpop.f32.mrb[0].mxu0
  %467 = vmatprep.mubr.f32.mxu0 0.0
  %468 = vmatmul.mubr.f32.gmra.mrb[0].mxu0 %v168
  %v469 = vpop.f32.mrb[0].mxu0
  %v470 = vadd.f32 %v104, %v469
  %v471 = vpop.f32.mrb[0].mxu0
  %472 = vmatprep.mubr.f32.mxu0 0.0
  %473 = vmatmul.mubr.f32.gmra.mrb[0].mxu0 %v171
  %v474 = vpop.f32.mrb[0].mxu0
  %v475 = vadd.f32 %v104, %v474
  %v476 = vpop.f32.mrb[0].mxu0
  %477 = vmatprep.mubr.f32.mxu0 0.0
  %478 = vmatmul.mubr.f32.gmra.mrb[0].mxu0 %v174
  %v479 = vpop.f32.mrb[0].mxu0
  %v480 = vadd.f32 %v104, %v479
  %v481 = vpop.f32.mrb[0].mxu0
  %482 = vmatprep.mubr.f32.mxu0 0.0
  %483 = vmatmul.mubr.f32.gmra.mrb[0].mxu0 %v177
  %v484 = vpop.f32.mrb[0].mxu0
  %v485 = vadd.f32 %v104, %v484
  %v486 = vpop.f32.mrb[0].mxu0
  %487 = vmatprep.mubr.f32.mxu0 0.0
  %488 = vmatmul.mubr.f32.gmra.mrb[0].mxu0 %v180
  %v489 = vpop.f32.mrb[0].mxu0
  %v490 = vadd.f32 %v104, %v489
  %v491 = vpop.f32.mrb[0].mxu0
  %492 = vmatprep.mubr.f32.mxu0 0.0
  %493 = vmatmul.mubr.f32.gmra.mrb[0].mxu0 %v183
  %v494 = vpop.f32.mrb[0].mxu0
  %v495 = vadd.f32 %v104, %v494
  %v496 = vpop.f32.mrb[0].mxu0
  %497 = vmatprep.mubr.f32.mxu0 0.0
  %498 = vmatmul.mubr.f32.gmra.mrb[0].mxu0 %v186
  %v499 = vpop.f32.mrb[0].mxu0
  %v500 = vadd.f32 %v104, %v499
  %v501 = vpop.f32.mrb[0].mxu0
  %502 = vmatprep.mubr.f32.mxu0 0.0
  %503 = vmatmul.mubr.f32.gmra.mrb[0].mxu0 %v189
  %v504 = vpop.f32.mrb[0].mxu0
  %v505 = vadd.f32 %v104, %v504
  %v506 = vpop.f32.mrb[0].mxu0
  %507 = vmatprep.mubr.f32.mxu0 0.0
  %508 = vmatmul.mubr.f32.gmra.mrb[0].mxu0 %v192
  %v509 = vpop.f32.mrb[0].mxu0
  %v510 = vadd.f32 %v104, %v509
  %v511 = vpop.f32.mrb[0].mxu0
  %512 = vmatprep.mubr.f32.mxu0 0.0
  %513 = vmatmul.mubr.f32.gmra.mrb[0].mxu0 %v195
  %v514 = vpop.f32.mrb[0].mxu0
  %v515 = vadd.f32 %v104, %v514
  %v516 = vpop.f32.mrb[0].mxu0
  %517 = vmatprep.mubr.f32.mxu0 0.0
  %518 = vmatmul.mubr.f32.gmra.mrb[0].mxu0 %v198
  %v519 = vpop.f32.mrb[0].mxu0
  %v520 = vadd.f32 %v104, %v519
  %v521 = vpop.f32.mrb[0].mxu0
  %522 = vmatprep.mubr.f32.mxu0 0.0
  %523 = vmatmul.mubr.f32.gmra.mrb[0].mxu0 %v201
  %v524 = vpop.f32.mrb[0].mxu0
  %v525 = vadd.f32 %v104, %v524
  %v526 = vpop.f32.mrb[0].mxu0
  %527 = vmatprep.mubr.f32.mxu0 0.0
  %528 = vmatmul.mubr.f32.gmra.mrb[0].mxu0 %v204
  %v529 = vpop.f32.mrb[0].mxu0
  %v530 = vadd.f32 %v104, %v529
  %v531 = vpop.f32.mrb[0].mxu0
  %532 = vmatprep.mubr.f32.mxu0 0.0
  %533 = vmatmul.mubr.f32.gmra.mrb[0].mxu0 %v207
  %v534 = vpop.f32.mrb[0].mxu0
  %v535 = vadd.f32 %v104, %v534
  %v536 = vpop.f32.mrb[0].mxu0
  %537 = vmatprep.mubr.f32.mxu0 0.0
  %538 = vmatmul.mubr.f32.gmra.mrb[0].mxu0 %v210
  %v539 = vpop.f32.mrb[0].mxu0
  %v540 = vadd.f32 %v104, %v539
  %v541 = vpop.f32.mrb[0].mxu0
  %542 = vmatprep.mubr.f32.mxu0 0.0
  %543 = vmatmul.mubr.f32.gmra.mrb[0].mxu0 %v213
  %v544 = vpop.f32.mrb[0].mxu0
  %v545 = vadd.f32 %v104, %v544
  %v546 = vpop.f32.mrb[0].mxu0
  %547 = vmatprep.mubr.f32.mxu0 0.0
  %548 = vmatmul.mubr.f32.gmra.mrb[0].mxu0 %v216
  %v549 = vpop.f32.mrb[0].mxu0
  %v550 = vadd.f32 %v104, %v549
  %v551 = vpop.f32.mrb[0].mxu0
  %552 = vmatprep.mubr.f32.mxu0 0.0
  %553 = vmatmul.mubr.f32.gmra.mrb[0].mxu0 %v219
  %v554 = vpop.f32.mrb[0].mxu0
  %v555 = vadd.f32 %v104, %v554
  %v556 = vpop.f32.mrb[0].mxu0
  %557 = vmatprep.mubr.f32.mxu0 0.0
  %558 = vmatmul.mubr.f32.gmra.mrb[0].mxu0 %v222
  %v559 = vpop.f32.mrb[0].mxu0
  %v560 = vadd.f32 %v104, %v559
  %v561 = vpop.f32.mrb[0].mxu0
  %562 = vmatprep.mubr.f32.mxu0 0.0
  %563 = vmatmul.mubr.f32.gmra.mrb[0].mxu0 %v225
  %v564 = vpop.f32.mrb[0].mxu0
  %v565 = vadd.f32 %v104, %v564
  %v566 = vpop.f32.mrb[0].mxu0
  %567 = vmatprep.mubr.f32.mxu0 0.0
  %568 = vmatmul.mubr.f32.gmra.mrb[0].mxu0 %v228
  %v569 = vpop.f32.mrb[0].mxu0
  %v570 = vadd.f32 %v104, %v569
  %v571 = vpop.f32.mrb[0].mxu0
  %572 = vmatprep.mubr.f32.mxu0 0.0
  %573 = vmatmul.mubr.f32.gmra.mrb[0].mxu0 %v231
  %v574 = vpop.f32.mrb[0].mxu0
  %v575 = vadd.f32 %v104, %v574
  %v576 = vpop.f32.mrb[0].mxu0
  %577 = vmatprep.mubr.f32.mxu0 0.0
  %578 = vmatmul.mubr.f32.gmra.mrb[0].mxu0 %v234
  %v579 = vpop.f32.mrb[0].mxu0
  %v580 = vadd.f32 %v104, %v579
  %v581 = vpop.f32.mrb[0].mxu0
  %582 = vmatprep.mubr.f32.mxu0 0.0
  %583 = vmatmul.mubr.f32.gmra.mrb[0].mxu0 %v237
  %v584 = vpop.f32.mrb[0].mxu0
  %v585 = vadd.f32 %v104, %v584
  %v586 = vpop.f32.mrb[0].mxu0
  %587 = vmatprep.mubr.f32.mxu0 0.0
  %588 = vmatmul.mubr.f32.gmra.mrb[0].mxu0 %v240
  %v589 = vpop.f32.mrb[0].mxu0
  %v590 = vadd.f32 %v104, %v589
  %v591 = vpop.f32.mrb[0].mxu0
  %592 = vmatprep.mubr.f32.mxu0 0.0
  %593 = vmatmul.mubr.f32.gmra.mrb[0].mxu0 %v243
  %v594 = vpop.f32.mrb[0].mxu0
  %v595 = vadd.f32 %v104, %v594
  %v596 = vpop.f32.mrb[0].mxu0
  %597 = vmatprep.mubr.f32.mxu0 0.0
  %598 = vmatmul.mubr.f32.gmra.mrb[0].mxu0 %v246
  %v599 = vpop.f32.mrb[0].mxu0
  %v600 = vadd.f32 %v104, %v599
  %v601 = vpop.f32.mrb[0].mxu0
  %602 = vmatprep.mubr.f32.mxu0 0.0
  %603 = vmatmul.mubr.f32.gmra.mrb[0].mxu0 %v249
  %v604 = vpop.f32.mrb[0].mxu0
  %v605 = vadd.f32 %v104, %v604
  %v606 = vpop.f32.mrb[0].mxu0
  %607 = vmatprep.mubr.f32.mxu0 0.0
  %608 = vmatmul.mubr.f32.gmra.mrb[0].mxu0 %v252
  %v609 = vpop.f32.mrb[0].mxu0
  %v610 = vadd.f32 %v104, %v609
  %v611 = vpop.f32.mrb[0].mxu0
  %612 = vmatprep.mubr.f32.mxu0 0.0
  %613 = vmatmul.mubr.f32.gmra.mrb[0].mxu0 %v255
  %v614 = vpop.f32.mrb[0].mxu0
  %v615 = vadd.f32 %v104, %v614
  %v616 = vpop.f32.mrb[0].mxu0
  %617 = vmatprep.mubr.f32.mxu0 0.0
  %618 = vmatmul.mubr.f32.gmra.mrb[0].mxu0 %v258
  %v619 = vpop.f32.mrb[0].mxu0
  %v620 = vadd.f32 %v104, %v619
  %v621 = vpop.f32.mrb[0].mxu0
  %622 = vmatprep.mubr.f32.mxu0 0.0
  %623 = vmatmul.mubr.f32.gmra.mrb[0].mxu0 %v261
  %v624 = vpop.f32.mrb[0].mxu0
  %v625 = vadd.f32 %v104, %v624
  %v626 = vpop.f32.mrb[0].mxu0
  %627 = vmatprep.mubr.f32.mxu0 0.0
  %628 = vmatmul.mubr.f32.gmra.mrb[0].mxu0 %v264
  %v629 = vpop.f32.mrb[0].mxu0
  %v630 = vadd.f32 %v104, %v629
  %v631 = vpop.f32.mrb[0].mxu0
  %632 = vmatprep.mubr.f32.mxu0 0.0
  %633 = vmatmul.mubr.f32.gmra.mrb[0].mxu0 %v267
  %v634 = vpop.f32.mrb[0].mxu0
  %v635 = vadd.f32 %v104, %v634
  %v636 = vpop.f32.mrb[0].mxu0
  %637 = vmatprep.mubr.f32.mxu0 0.0
  %638 = vmatmul.mubr.f32.gmra.mrb[0].mxu0 %v270
  %v639 = vpop.f32.mrb[0].mxu0
  %v640 = vadd.f32 %v104, %v639
  %v641 = vpop.f32.mrb[0].mxu0
  %642 = vmatprep.mubr.f32.mxu0 0.0
  %643 = vmatmul.mubr.f32.gmra.mrb[0].mxu0 %v273
  %v644 = vpop.f32.mrb[0].mxu0
  %v645 = vadd.f32 %v104, %v644
  %v646 = vpop.f32.mrb[0].mxu0
  %647 = vmatprep.mubr.f32.mxu0 0.0
  %648 = vmatmul.mubr.f32.gmra.mrb[0].mxu0 %v276
  %v649 = vpop.f32.mrb[0].mxu0
  %v650 = vadd.f32 %v104, %v649
  %v651 = vpop.f32.mrb[0].mxu0
  %652 = vmatprep.mubr.f32.mxu0 0.0
  %653 = vmatmul.mubr.f32.gmra.mrb[0].mxu0 %v279
  %v654 = vpop.f32.mrb[0].mxu0
  %v655 = vadd.f32 %v104, %v654
  %v656 = vpop.f32.mrb[0].mxu0
  %657 = vmatprep.mubr.f32.mxu0 0.0
  %658 = vmatmul.mubr.f32.gmra.mrb[0].mxu0 %v282
  %v659 = vpop.f32.mrb[0].mxu0
  %v660 = vadd.f32 %v104, %v659
  %v661 = vpop.f32.mrb[0].mxu0
  %662 = vmatprep.mubr.f32.mxu0 0.0
  %663 = vmatmul.mubr.f32.gmra.mrb[0].mxu0 %v285
  %v664 = vpop.f32.mrb[0].mxu0
  %v665 = vadd.f32 %v104, %v664
  %v666 = vpop.f32.mrb[0].mxu0
  %667 = vmatprep.mubr.f32.mxu0 0.0
  %668 = vmatmul.mubr.f32.gmra.mrb[0].mxu0 %v288
  %v669 = vpop.f32.mrb[0].mxu0
  %v670 = vadd.f32 %v104, %v669
  %v671 = vpop.f32.mrb[0].mxu0
  %672 = vmatprep.mubr.f32.mxu0 0.0
  %673 = vmatmul.mubr.f32.gmra.mrb[0].mxu0 %v291
  %v674 = vpop.f32.mrb[0].mxu0
  %v675 = vadd.f32 %v104, %v674
  %v676 = vpop.f32.mrb[0].mxu0
  %677 = vmatprep.mubr.f32.mxu0 0.0
  %678 = vmatmul.mubr.f32.gmra.mrb[0].mxu0 %v294
  %v679 = vpop.f32.mrb[0].mxu0
  %v680 = vadd.f32 %v104, %v679
  %v681 = vpop.f32.mrb[0].mxu0
  %682 = vmatprep.mubr.f32.mxu0 0.0
  %683 = vmatmul.mubr.f32.gmra.mrb[0].mxu0 %v297
  %v684 = vpop.f32.mrb[0].mxu0
  %v685 = vadd.f32 %v104, %v684
  %v686 = vpop.f32.mrb[0].mxu0
  %687 = vdwg.mxu0
  %v688 = vmax.f32 %v370, 0.0
  %v689 = vmax.f32 %v375, 0.0
  %v690 = vmax.f32 %v380, 0.0
  %v691 = vmax.f32 %v385, 0.0
  %v692 = vmax.f32 %v390, 0.0
  %v693 = vmax.f32 %v395, 0.0
  %v694 = vmax.f32 %v400, 0.0
  %v695 = vmax.f32 %v405, 0.0
  %v696 = vmax.f32 %v410, 0.0
  %v697 = vmax.f32 %v415, 0.0
  %v698 = vmax.f32 %v420, 0.0
  %v699 = vmax.f32 %v425, 0.0
  %v700 = vmax.f32 %v430, 0.0
  %v701 = vmax.f32 %v435, 0.0
  %v702 = vmax.f32 %v440, 0.0
  %v703 = vmax.f32 %v445, 0.0
  %v704 = vmax.f32 %v450, 0.0
  %v705 = vmax.f32 %v455, 0.0
  %v706 = vmax.f32 %v460, 0.0
  %v707 = vmax.f32 %v465, 0.0
  %v708 = vmax.f32 %v470, 0.0
  %v709 = vmax.f32 %v475, 0.0
  %v710 = vmax.f32 %v480, 0.0
  %v711 = vmax.f32 %v485, 0.0
  %v712 = vmax.f32 %v490, 0.0
  %v713 = vmax.f32 %v495, 0.0
  %v714 = vmax.f32 %v500, 0.0
  %v715 = vmax.f32 %v505, 0.0
  %v716 = vmax.f32 %v510, 0.0
  %v717 = vmax.f32 %v515, 0.0
  %v718 = vmax.f32 %v520, 0.0
  %v719 = vmax.f32 %v525, 0.0
  %v720 = vmax.f32 %v530, 0.0
  %v721 = vmax.f32 %v535, 0.0
  %v722 = vmax.f32 %v540, 0.0
  %v723 = vmax.f32 %v545, 0.0
  %v724 = vmax.f32 %v550, 0.0
  %v725 = vmax.f32 %v555, 0.0
  %v726 = vmax.f32 %v560, 0.0
  %v727 = vmax.f32 %v565, 0.0
  %v728 = vmax.f32 %v570, 0.0
  %v729 = vmax.f32 %v575, 0.0
  %v730 = vmax.f32 %v580, 0.0
  %v731 = vmax.f32 %v585, 0.0
  %v732 = vmax.f32 %v590, 0.0
  %v733 = vmax.f32 %v595, 0.0
  %v734 = vmax.f32 %v600, 0.0
  %v735 = vmax.f32 %v605, 0.0
  %v736 = vmax.f32 %v610, 0.0
  %v737 = vmax.f32 %v615, 0.0
  %v738 = vmax.f32 %v620, 0.0
  %v739 = vmax.f32 %v625, 0.0
  %v740 = vmax.f32 %v630, 0.0
  %v741 = vmax.f32 %v635, 0.0
  %v742 = vmax.f32 %v640, 0.0
  %v743 = vmax.f32 %v645, 0.0
  %v744 = vmax.f32 %v650, 0.0
  %v745 = vmax.f32 %v655, 0.0
  %v746 = vmax.f32 %v660, 0.0
  %v747 = vmax.f32 %v665, 0.0
  %v748 = vmax.f32 %v670, 0.0
  %v749 = vmax.f32 %v675, 0.0
  %v750 = vmax.f32 %v680, 0.0
  %v751 = vmax.f32 %v685, 0.0
  %v752 = vld [vmem:[%s1] sm:$0xff]
  %v754 = vcombine.high %v752, %v752
  %v756 = vunpack.c.l.s4 1983009808
  %v757 = vunpack.c.0.s8 %v756
  %v758 = vlaneseq
  %v759 = vshrl.u32 %v758, 7
  %v760 = vsub.s32 %v757, %v759
  %v761 = vrot.slane %v752, %v760
  %v763 = vunpack.c.l.s4 1983009808
  %v764 = vunpack.c.0.s8 %v763
  %v765 = vlaneseq
  %v766 = vshrl.u32 %v765, 7
  %v767 = vsub.s32 %v764, %v766
  %v768 = vrot.slane %v754, %v767
  %v769 = vcombine.high %v761, %v761
  %v770 = vcombine.high %v768, %v768
  %775 = vmatprep.subr.mxu0 0.0
  %776 = vmatpush1.msra.mxu0 %v688
  %777 = vmatprep.subr.mxu0 0.0
  %778 = vmatpush1.msra.mxu0 %v689
  %779 = vmatprep.subr.mxu0 0.0
  %780 = vmatpush1.msra.mxu0 %v690
  %781 = vmatprep.subr.mxu0 0.0
  %782 = vmatpush1.msra.mxu0 %v691
  %783 = vmatprep.subr.mxu0 0.0
  %784 = vmatpush1.msra.mxu0 %v692
  %785 = vmatprep.subr.mxu0 0.0
  %786 = vmatpush1.msra.mxu0 %v693
  %787 = vmatprep.subr.mxu0 0.0
  %788 = vmatpush1.msra.mxu0 %v694
  %789 = vmatprep.subr.mxu0 0.0
  %790 = vmatpush1.msra.mxu0 %v695
  %791 = vmatprep.subr.mxu0 0.0
  %792 = vmatpush1.msra.mxu0 %v696
  %793 = vmatprep.subr.mxu0 0.0
  %794 = vmatpush1.msra.mxu0 %v697
  %795 = vmatprep.subr.mxu0 0.0
  %796 = vmatpush1.msra.mxu0 %v698
  %797 = vmatprep.subr.mxu0 0.0
  %798 = vmatpush1.msra.mxu0 %v699
  %799 = vmatprep.subr.mxu0 0.0
  %800 = vmatpush1.msra.mxu0 %v700
  %801 = vmatprep.subr.mxu0 0.0
  %802 = vmatpush1.msra.mxu0 %v701
  %803 = vmatprep.subr.mxu0 0.0
  %804 = vmatpush1.msra.mxu0 %v702
  %805 = vmatprep.subr.mxu0 0.0
  %806 = vmatpush1.msra.mxu0 %v703
  %807 = vmatprep.subr.mxu0 0.0
  %808 = vmatpush1.msra.mxu0 %v704
  %809 = vmatprep.subr.mxu0 0.0
  %810 = vmatpush1.msra.mxu0 %v705
  %811 = vmatprep.subr.mxu0 0.0
  %812 = vmatpush1.msra.mxu0 %v706
  %813 = vmatprep.subr.mxu0 0.0
  %814 = vmatpush1.msra.mxu0 %v707
  %815 = vmatprep.subr.mxu0 0.0
  %816 = vmatpush1.msra.mxu0 %v708
  %817 = vmatprep.subr.mxu0 0.0
  %818 = vmatpush1.msra.mxu0 %v709
  %819 = vmatprep.subr.mxu0 0.0
  %820 = vmatpush1.msra.mxu0 %v710
  %821 = vmatprep.subr.mxu0 0.0
  %822 = vmatpush1.msra.mxu0 %v711
  %823 = vmatprep.subr.mxu0 0.0
  %824 = vmatpush1.msra.mxu0 %v712
  %825 = vmatprep.subr.mxu0 0.0
  %826 = vmatpush1.msra.mxu0 %v713
  %827 = vmatprep.subr.mxu0 0.0
  %828 = vmatpush1.msra.mxu0 %v714
  %829 = vmatprep.subr.mxu0 0.0
  %830 = vmatpush1.msra.mxu0 %v715
  %831 = vmatprep.subr.mxu0 0.0
  %832 = vmatpush1.msra.mxu0 %v716
  %833 = vmatprep.subr.mxu0 0.0
  %834 = vmatpush1.msra.mxu0 %v717
  %835 = vmatprep.subr.mxu0 0.0
  %836 = vmatpush1.msra.mxu0 %v718
  %837 = vmatprep.subr.mxu0 0.0
  %838 = vmatpush1.msra.mxu0 %v719
  %839 = vmatprep.mubr.f32.mxu0 %v769
  %840 = vmatmul.mubr.f32.gmra.mrb[0].mxu0 %v761
  %v841 = vpop.f32.mrb[0].mxu0
  %v842 = vadd.f32 0.0, %v841
  %v843 = vpop.f32.mrb[0].mxu0
  %844 = vdwg.mxu0
  %845 = vmatprep.subr.mxu0 0.0
  %846 = vmatpush1.msra.mxu0 %v720
  %847 = vmatprep.subr.mxu0 0.0
  %848 = vmatpush1.msra.mxu0 %v721
  %849 = vmatprep.subr.mxu0 0.0
  %850 = vmatpush1.msra.mxu0 %v722
  %851 = vmatprep.subr.mxu0 0.0
  %852 = vmatpush1.msra.mxu0 %v723
  %853 = vmatprep.subr.mxu0 0.0
  %854 = vmatpush1.msra.mxu0 %v724
  %855 = vmatprep.subr.mxu0 0.0
  %856 = vmatpush1.msra.mxu0 %v725
  %857 = vmatprep.subr.mxu0 0.0
  %858 = vmatpush1.msra.mxu0 %v726
  %859 = vmatprep.subr.mxu0 0.0
  %860 = vmatpush1.msra.mxu0 %v727
  %861 = vmatprep.subr.mxu0 0.0
  %862 = vmatpush1.msra.mxu0 %v728
  %863 = vmatprep.subr.mxu0 0.0
  %864 = vmatpush1.msra.mxu0 %v729
  %865 = vmatprep.subr.mxu0 0.0
  %866 = vmatpush1.msra.mxu0 %v730
  %867 = vmatprep.subr.mxu0 0.0
  %868 = vmatpush1.msra.mxu0 %v731
  %869 = vmatprep.subr.mxu0 0.0
  %870 = vmatpush1.msra.mxu0 %v732
  %871 = vmatprep.subr.mxu0 0.0
  %872 = vmatpush1.msra.mxu0 %v733
  %873 = vmatprep.subr.mxu0 0.0
  %874 = vmatpush1.msra.mxu0 %v734
  %875 = vmatprep.subr.mxu0 0.0
  %876 = vmatpush1.msra.mxu0 %v735
  %877 = vmatprep.subr.mxu0 0.0
  %878 = vmatpush1.msra.mxu0 %v736
  %879 = vmatprep.subr.mxu0 0.0
  %880 = vmatpush1.msra.mxu0 %v737
  %881 = vmatprep.subr.mxu0 0.0
  %882 = vmatpush1.msra.mxu0 %v738
  %883 = vmatprep.subr.mxu0 0.0
  %884 = vmatpush1.msra.mxu0 %v739
  %885 = vmatprep.subr.mxu0 0.0
  %886 = vmatpush1.msra.mxu0 %v740
  %887 = vmatprep.subr.mxu0 0.0
  %888 = vmatpush1.msra.mxu0 %v741
  %889 = vmatprep.subr.mxu0 0.0
  %890 = vmatpush1.msra.mxu0 %v742
  %891 = vmatprep.subr.mxu0 0.0
  %892 = vmatpush1.msra.mxu0 %v743
  %893 = vmatprep.subr.mxu0 0.0
  %894 = vmatpush1.msra.mxu0 %v744
  %895 = vmatprep.subr.mxu0 0.0
  %896 = vmatpush1.msra.mxu0 %v745
  %897 = vmatprep.subr.mxu0 0.0
  %898 = vmatpush1.msra.mxu0 %v746
  %899 = vmatprep.subr.mxu0 0.0
  %900 = vmatpush1.msra.mxu0 %v747
  %901 = vmatprep.subr.mxu0 0.0
  %902 = vmatpush1.msra.mxu0 %v748
  %903 = vmatprep.subr.mxu0 0.0
  %904 = vmatpush1.msra.mxu0 %v749
  %905 = vmatprep.subr.mxu0 0.0
  %906 = vmatpush1.msra.mxu0 %v750
  %907 = vmatprep.subr.mxu0 0.0
  %908 = vmatpush1.msra.mxu0 %v751
  %909 = vmatprep.mubr.f32.mxu0 %v770
  %910 = vmatmul.mubr.f32.gmra.mrb[0].mxu0 %v768
  %v911 = vpop.f32.mrb[0].mxu0
  %v912 = vadd.f32 %v842, %v911
  %v913 = vpop.f32.mrb[0].mxu0
  %914 = vdwg.mxu0
  %v915 = vld [vmem:[%s4] sm:$0xff]
  %v916 = vld [vmem:[%s4 + $0x8] sm:$0xff]
  %v917 = vld [vmem:[%s4 + $0x10] sm:$0xff]
  %v918 = vld [vmem:[%s4 + $0x18] sm:$0xff]
  %v919 = vld [vmem:[%s4 + $0x20] sm:$0xff]
  %v920 = vld [vmem:[%s4 + $0x28] sm:$0xff]
  %v921 = vld [vmem:[%s4 + $0x30] sm:$0xff]
  %v922 = vld [vmem:[%s4 + $0x38] sm:$0xff]
  %v923 = vld [vmem:[%s4 + $0x40] sm:$0xff]
  %v924 = vld [vmem:[%s4 + $0x48] sm:$0xff]
  %v925 = vld [vmem:[%s4 + $0x50] sm:$0xff]
  %v926 = vld [vmem:[%s4 + $0x58] sm:$0xff]
  %v927 = vld [vmem:[%s4 + $0x60] sm:$0xff]
  %v928 = vld [vmem:[%s4 + $0x68] sm:$0xff]
  %v929 = vld [vmem:[%s4 + $0x70] sm:$0xff]
  %v930 = vld [vmem:[%s4 + $0x78] sm:$0xff]
  %v931 = vld [vmem:[%s4 + $0x80] sm:$0xff]
  %v932 = vld [vmem:[%s4 + $0x88] sm:$0xff]
  %v933 = vld [vmem:[%s4 + $0x90] sm:$0xff]
  %v934 = vld [vmem:[%s4 + $0x98] sm:$0xff]
  %v935 = vld [vmem:[%s4 + $0xa0] sm:$0xff]
  %v936 = vld [vmem:[%s4 + $0xa8] sm:$0xff]
  %v937 = vld [vmem:[%s4 + $0xb0] sm:$0xff]
  %v938 = vld [vmem:[%s4 + $0xb8] sm:$0xff]
  %v939 = vld [vmem:[%s4 + $0xc0] sm:$0xff]
  %v940 = vld [vmem:[%s4 + $0xc8] sm:$0xff]
  %v941 = vld [vmem:[%s4 + $0xd0] sm:$0xff]
  %v942 = vld [vmem:[%s4 + $0xd8] sm:$0xff]
  %v943 = vld [vmem:[%s4 + $0xe0] sm:$0xff]
  %v944 = vld [vmem:[%s4 + $0xe8] sm:$0xff]
  %v945 = vld [vmem:[%s4 + $0xf0] sm:$0xff]
  %v946 = vld [vmem:[%s4 + $0xf8] sm:$0xff]
  %v947 = vld [vmem:[%s4 + $0x100] sm:$0xff]
  %v948 = vld [vmem:[%s4 + $0x108] sm:$0xff]
  %v949 = vld [vmem:[%s4 + $0x110] sm:$0xff]
  %v950 = vld [vmem:[%s4 + $0x118] sm:$0xff]
  %v951 = vld [vmem:[%s4 + $0x120] sm:$0xff]
  %v952 = vld [vmem:[%s4 + $0x128] sm:$0xff]
  %v953 = vld [vmem:[%s4 + $0x130] sm:$0xff]
  %v954 = vld [vmem:[%s4 + $0x138] sm:$0xff]
  %v955 = vld [vmem:[%s4 + $0x140] sm:$0xff]
  %v956 = vld [vmem:[%s4 + $0x148] sm:$0xff]
  %v957 = vld [vmem:[%s4 + $0x150] sm:$0xff]
  %v958 = vld [vmem:[%s4 + $0x158] sm:$0xff]
  %v959 = vld [vmem:[%s4 + $0x160] sm:$0xff]
  %v960 = vld [vmem:[%s4 + $0x168] sm:$0xff]
  %v961 = vld [vmem:[%s4 + $0x170] sm:$0xff]
  %v962 = vld [vmem:[%s4 + $0x178] sm:$0xff]
  %v963 = vld [vmem:[%s4 + $0x180] sm:$0xff]
  %v964 = vld [vmem:[%s4 + $0x188] sm:$0xff]
  %v965 = vld [vmem:[%s4 + $0x190] sm:$0xff]
  %v966 = vld [vmem:[%s4 + $0x198] sm:$0xff]
  %v967 = vld [vmem:[%s4 + $0x1a0] sm:$0xff]
  %v968 = vld [vmem:[%s4 + $0x1a8] sm:$0xff]
  %v969 = vld [vmem:[%s4 + $0x1b0] sm:$0xff]
  %v970 = vld [vmem:[%s4 + $0x1b8] sm:$0xff]
  %v971 = vld [vmem:[%s4 + $0x1c0] sm:$0xff]
  %v972 = vld [vmem:[%s4 + $0x1c8] sm:$0xff]
  %v973 = vld [vmem:[%s4 + $0x1d0] sm:$0xff]
  %v974 = vld [vmem:[%s4 + $0x1d8] sm:$0xff]
  %v975 = vld [vmem:[%s4 + $0x1e0] sm:$0xff]
  %v976 = vld [vmem:[%s4 + $0x1e8] sm:$0xff]
  %v977 = vld [vmem:[%s4 + $0x1f0] sm:$0xff]
  %v978 = vld [vmem:[%s4 + $0x1f8] sm:$0xff]
  %v979 = vld [vmem:[%s5] sm:$0xf]
  %v981 = vlaneseq
  %v982 = vshrl.u32 %v981, 7
  %v983 = vsub.s32 0, %v982
  %v984 = vrot.slane %v979, %v983
  %v985 = vlaneseq
  %v986 = vshrl.u32 %v985, 7
  %v987 = vsub.s32 1, %v986
  %v988 = vrot.slane %v979, %v987
  %v989 = vlaneseq
  %v990 = vshrl.u32 %v989, 7
  %v991 = vsub.s32 2, %v990
  %v992 = vrot.slane %v979, %v991
  %v993 = vlaneseq
  %v994 = vshrl.u32 %v993, 7
  %v995 = vsub.s32 3, %v994
  %v996 = vrot.slane %v979, %v995
  %1001 = vmatprep.subr.mxu0 %v916
  %1002 = vmatpush1.msra.mxu0 %v915
  %1003 = vmatprep.subr.mxu0 %v920
  %1004 = vmatpush1.msra.mxu0 %v919
  %1005 = vmatprep.subr.mxu0 %v924
  %1006 = vmatpush1.msra.mxu0 %v923
  %1007 = vmatprep.subr.mxu0 %v928
  %1008 = vmatpush1.msra.mxu0 %v927
  %1009 = vmatprep.subr.mxu0 %v932
  %1010 = vmatpush1.msra.mxu0 %v931
  %1011 = vmatprep.subr.mxu0 %v936
  %1012 = vmatpush1.msra.mxu0 %v935
  %1013 = vmatprep.subr.mxu0 %v940
  %1014 = vmatpush1.msra.mxu0 %v939
  %1015 = vmatprep.subr.mxu0 %v944
  %1016 = vmatpush1.msra.mxu0 %v943
  %1017 = vmatprep.subr.mxu0 %v948
  %1018 = vmatpush1.msra.mxu0 %v947
  %1019 = vmatprep.subr.mxu0 %v952
  %1020 = vmatpush1.msra.mxu0 %v951
  %1021 = vmatprep.subr.mxu0 %v956
  %1022 = vmatpush1.msra.mxu0 %v955
  %1023 = vmatprep.subr.mxu0 %v960
  %1024 = vmatpush1.msra.mxu0 %v959
  %1025 = vmatprep.subr.mxu0 %v964
  %1026 = vmatpush1.msra.mxu0 %v963
  %1027 = vmatprep.subr.mxu0 %v968
  %1028 = vmatpush1.msra.mxu0 %v967
  %1029 = vmatprep.subr.mxu0 %v972
  %1030 = vmatpush1.msra.mxu0 %v971
  %1031 = vmatprep.subr.mxu0 %v976
  %1032 = vmatpush1.msra.mxu0 %v975
  %1033 = vmatprep.subr.mxu0 0.0
  %1034 = vmatpush1.msra.mxu0 0.0
  %1035 = vmatprep.subr.mxu0 0.0
  %1036 = vmatpush1.msra.mxu0 0.0
  %1037 = vmatprep.subr.mxu0 0.0
  %1038 = vmatpush1.msra.mxu0 0.0
  %1039 = vmatprep.subr.mxu0 0.0
  %1040 = vmatpush1.msra.mxu0 0.0
  %1041 = vmatprep.subr.mxu0 0.0
  %1042 = vmatpush1.msra.mxu0 0.0
  %1043 = vmatprep.subr.mxu0 0.0
  %1044 = vmatpush1.msra.mxu0 0.0
  %1045 = vmatprep.subr.mxu0 0.0
  %1046 = vmatpush1.msra.mxu0 0.0
  %1047 = vmatprep.subr.mxu0 0.0
  %1048 = vmatpush1.msra.mxu0 0.0
  %1049 = vmatprep.subr.mxu0 0.0
  %1050 = vmatpush1.msra.mxu0 0.0
  %1051 = vmatprep.subr.mxu0 0.0
  %1052 = vmatpush1.msra.mxu0 0.0
  %1053 = vmatprep.subr.mxu0 0.0
  %1054 = vmatpush1.msra.mxu0 0.0
  %1055 = vmatprep.subr.mxu0 0.0
  %1056 = vmatpush1.msra.mxu0 0.0
  %1057 = vmatprep.subr.mxu0 0.0
  %1058 = vmatpush1.msra.mxu0 0.0
  %1059 = vmatprep.subr.mxu0 0.0
  %1060 = vmatpush1.msra.mxu0 0.0
  %1061 = vmatprep.subr.mxu0 0.0
  %1062 = vmatpush1.msra.mxu0 0.0
  %1063 = vmatprep.subr.mxu0 0.0
  %1064 = vmatpush1.msra.mxu0 0.0
  %1065 = vmatprep.mubr.f32.mxu0 0.0
  %1066 = vmatmul.mubr.f32.gmra.mrb[0].mxu0 %v912
  %v1067 = vpop.f32.mrb[0].mxu0
  %v1068 = vadd.f32 %v984, %v1067
  %v1069 = vpop.f32.mrb[0].mxu0
  %v1070 = vadd.f32 %v988, %v1069
  %1071 = vdwg.mxu0
  %1072 = vmatprep.subr.mxu0 %v918
  %1073 = vmatpush1.msra.mxu0 %v917
  %1074 = vmatprep.subr.mxu0 %v922
  %1075 = vmatpush1.msra.mxu0 %v921
  %1076 = vmatprep.subr.mxu0 %v926
  %1077 = vmatpush1.msra.mxu0 %v925
  %1078 = vmatprep.subr.mxu0 %v930
  %1079 = vmatpush1.msra.mxu0 %v929
  %1080 = vmatprep.subr.mxu0 %v934
  %1081 = vmatpush1.msra.mxu0 %v933
  %1082 = vmatprep.subr.mxu0 %v938
  %1083 = vmatpush1.msra.mxu0 %v937
  %1084 = vmatprep.subr.mxu0 %v942
  %1085 = vmatpush1.msra.mxu0 %v941
  %1086 = vmatprep.subr.mxu0 %v946
  %1087 = vmatpush1.msra.mxu0 %v945
  %1088 = vmatprep.subr.mxu0 %v950
  %1089 = vmatpush1.msra.mxu0 %v949
  %1090 = vmatprep.subr.mxu0 %v954
  %1091 = vmatpush1.msra.mxu0 %v953
  %1092 = vmatprep.subr.mxu0 %v958
  %1093 = vmatpush1.msra.mxu0 %v957
  %1094 = vmatprep.subr.mxu0 %v962
  %1095 = vmatpush1.msra.mxu0 %v961
  %1096 = vmatprep.subr.mxu0 %v966
  %1097 = vmatpush1.msra.mxu0 %v965
  %1098 = vmatprep.subr.mxu0 %v970
  %1099 = vmatpush1.msra.mxu0 %v969
  %1100 = vmatprep.subr.mxu0 %v974
  %1101 = vmatpush1.msra.mxu0 %v973
  %1102 = vmatprep.subr.mxu0 %v978
  %1103 = vmatpush1.msra.mxu0 %v977
  %1104 = vmatprep.subr.mxu0 0.0
  %1105 = vmatpush1.msra.mxu0 0.0
  %1106 = vmatprep.subr.mxu0 0.0
  %1107 = vmatpush1.msra.mxu0 0.0
  %1108 = vmatprep.subr.mxu0 0.0
  %1109 = vmatpush1.msra.mxu0 0.0
  %1110 = vmatprep.subr.mxu0 0.0
  %1111 = vmatpush1.msra.mxu0 0.0
  %1112 = vmatprep.subr.mxu0 0.0
  %1113 = vmatpush1.msra.mxu0 0.0
  %1114 = vmatprep.subr.mxu0 0.0
  %1115 = vmatpush1.msra.mxu0 0.0
  %1116 = vmatprep.subr.mxu0 0.0
  %1117 = vmatpush1.msra.mxu0 0.0
  %1118 = vmatprep.subr.mxu0 0.0
  %1119 = vmatpush1.msra.mxu0 0.0
  %1120 = vmatprep.subr.mxu0 0.0
  %1121 = vmatpush1.msra.mxu0 0.0
  %1122 = vmatprep.subr.mxu0 0.0
  %1123 = vmatpush1.msra.mxu0 0.0
  %1124 = vmatprep.subr.mxu0 0.0
  %1125 = vmatpush1.msra.mxu0 0.0
  %1126 = vmatprep.subr.mxu0 0.0
  %1127 = vmatpush1.msra.mxu0 0.0
  %1128 = vmatprep.subr.mxu0 0.0
  %1129 = vmatpush1.msra.mxu0 0.0
  %1130 = vmatprep.subr.mxu0 0.0
  %1131 = vmatpush1.msra.mxu0 0.0
  %1132 = vmatprep.subr.mxu0 0.0
  %1133 = vmatpush1.msra.mxu0 0.0
  %1134 = vmatprep.subr.mxu0 0.0
  %1135 = vmatpush1.msra.mxu0 0.0
  %1136 = vmatprep.mubr.f32.mxu0 0.0
  %1137 = vmatmul.mubr.f32.gmra.mrb[0].mxu0 %v912
  %v1138 = vpop.f32.mrb[0].mxu0
  %v1139 = vadd.f32 %v992, %v1138
  %v1140 = vpop.f32.mrb[0].mxu0
  %v1141 = vadd.f32 %v996, %v1140
  %1142 = vdwg.mxu0
  %v1143 = vmul.f32 %v1068, %v1068
  %v1144 = vmul.f32 %v1070, %v1070
  %v1145 = vmul.f32 %v1139, %v1139
  %v1146 = vmul.f32 %v1141, %v1141
  %vm1147 = vcmask 1041408
  %v1148 = vsel %vm1147, %v1143, 0.0
  %v1149 = vsel %vm1147, %v1144, 0.0
  %v1150 = vadd.f32 %v1148, %v1149
  %v1151 = vsel %vm1147, %v1145, 0.0
  %v1152 = vadd.f32 %v1150, %v1151
  %v1153 = vsel %vm1147, %v1146, 0.0
  %v1154 = vadd.f32 %v1152, %v1153
  %1155 = vadd.xlane.f32.xlu0 %v1154
  %v1156 = vpop.xlane.xlu0 %1155
  %v1157 = vmax.f32 %v1156, 1e-24
  %v1158 = vrsqrt.pop %v1157
  %v1159 = vmul.f32 %v1068, %v1158
  %v1160 = vmul.f32 %v1070, %v1158
  %v1161 = vmul.f32 %v1139, %v1158
  %v1162 = vmul.f32 %v1141, %v1158
  %v1163 = vld [vmem:[%s6] sm:$0xff]
  %v1164 = vld [vmem:[%s6 + $0x8] sm:$0xff]
  %v1165 = vld [vmem:[%s6 + $0x10] sm:$0xff]
  %v1166 = vld [vmem:[%s6 + $0x18] sm:$0xff]
  %v1167 = vld [vmem:[%s6 + $0x20] sm:$0xff]
  %v1168 = vld [vmem:[%s6 + $0x28] sm:$0xff]
  %v1169 = vld [vmem:[%s6 + $0x30] sm:$0xff]
  %v1170 = vld [vmem:[%s6 + $0x38] sm:$0xff]
  %v1171 = vld [vmem:[%s6 + $0x40] sm:$0xff]
  %v1172 = vld [vmem:[%s6 + $0x48] sm:$0xff]
  %v1173 = vld [vmem:[%s6 + $0x50] sm:$0xff]
  %v1174 = vld [vmem:[%s6 + $0x58] sm:$0xff]
  %v1175 = vld [vmem:[%s6 + $0x60] sm:$0xff]
  %v1176 = vld [vmem:[%s6 + $0x68] sm:$0xff]
  %v1177 = vld [vmem:[%s6 + $0x70] sm:$0xff]
  %v1178 = vld [vmem:[%s6 + $0x78] sm:$0xff]
  %v1179 = vld [vmem:[%s6 + $0x80] sm:$0xff]
  %v1180 = vld [vmem:[%s6 + $0x88] sm:$0xff]
  %v1181 = vld [vmem:[%s6 + $0x90] sm:$0xff]
  %v1182 = vld [vmem:[%s6 + $0x98] sm:$0xff]
  %v1183 = vld [vmem:[%s6 + $0xa0] sm:$0xff]
  %v1184 = vld [vmem:[%s6 + $0xa8] sm:$0xff]
  %v1185 = vld [vmem:[%s6 + $0xb0] sm:$0xff]
  %v1186 = vld [vmem:[%s6 + $0xb8] sm:$0xff]
  %v1187 = vld [vmem:[%s6 + $0xc0] sm:$0xff]
  %v1188 = vld [vmem:[%s6 + $0xc8] sm:$0xff]
  %v1189 = vld [vmem:[%s6 + $0xd0] sm:$0xff]
  %v1190 = vld [vmem:[%s6 + $0xd8] sm:$0xff]
  %v1191 = vld [vmem:[%s6 + $0xe0] sm:$0xff]
  %v1192 = vld [vmem:[%s6 + $0xe8] sm:$0xff]
  %v1193 = vld [vmem:[%s6 + $0xf0] sm:$0xff]
  %v1194 = vld [vmem:[%s6 + $0xf8] sm:$0xff]
  %v1195 = vld [vmem:[%s6 + $0x100] sm:$0xff]
  %v1196 = vld [vmem:[%s6 + $0x108] sm:$0xff]
  %v1197 = vld [vmem:[%s6 + $0x110] sm:$0xff]
  %v1198 = vld [vmem:[%s6 + $0x118] sm:$0xff]
  %v1199 = vld [vmem:[%s6 + $0x120] sm:$0xff]
  %v1200 = vld [vmem:[%s6 + $0x128] sm:$0xff]
  %v1201 = vld [vmem:[%s6 + $0x130] sm:$0xff]
  %v1202 = vld [vmem:[%s6 + $0x138] sm:$0xff]
  %v1203 = vld [vmem:[%s6 + $0x140] sm:$0xff]
  %v1204 = vld [vmem:[%s6 + $0x148] sm:$0xff]
  %v1205 = vld [vmem:[%s6 + $0x150] sm:$0xff]
  %v1206 = vld [vmem:[%s6 + $0x158] sm:$0xff]
  %v1207 = vld [vmem:[%s6 + $0x160] sm:$0xff]
  %v1208 = vld [vmem:[%s6 + $0x168] sm:$0xff]
  %v1209 = vld [vmem:[%s6 + $0x170] sm:$0xff]
  %v1210 = vld [vmem:[%s6 + $0x178] sm:$0xff]
  %v1211 = vld [vmem:[%s6 + $0x180] sm:$0xff]
  %v1212 = vld [vmem:[%s6 + $0x188] sm:$0xff]
  %v1213 = vld [vmem:[%s6 + $0x190] sm:$0xff]
  %v1214 = vld [vmem:[%s6 + $0x198] sm:$0xff]
  %v1215 = vld [vmem:[%s6 + $0x1a0] sm:$0xff]
  %v1216 = vld [vmem:[%s6 + $0x1a8] sm:$0xff]
  %v1217 = vld [vmem:[%s6 + $0x1b0] sm:$0xff]
  %v1218 = vld [vmem:[%s6 + $0x1b8] sm:$0xff]
  %v1219 = vld [vmem:[%s6 + $0x1c0] sm:$0xff]
  %v1220 = vld [vmem:[%s6 + $0x1c8] sm:$0xff]
  %v1221 = vld [vmem:[%s6 + $0x1d0] sm:$0xff]
  %v1222 = vld [vmem:[%s6 + $0x1d8] sm:$0xff]
  %v1223 = vld [vmem:[%s6 + $0x1e0] sm:$0xff]
  %v1224 = vld [vmem:[%s6 + $0x1e8] sm:$0xff]
  %v1225 = vld [vmem:[%s6 + $0x1f0] sm:$0xff]
  %v1226 = vld [vmem:[%s6 + $0x1f8] sm:$0xff]
  %v1227 = vld [vmem:[#allocation2] sm:$0x1]
  %v1229 = vlaneseq
  %v1230 = vshrl.u32 %v1229, 7
  %v1231 = vsub.s32 0, %v1230
  %v1232 = vrot.slane %v1227, %v1231
  %1234 = vmatprep.subr.mxu0 0.0
  %1235 = vmatpush1.msra.mxu0 %v1163
  %1236 = vmatprep.subr.mxu0 0.0
  %1237 = vmatpush1.msra.mxu0 %v1164
  %1238 = vmatprep.subr.mxu0 0.0
  %1239 = vmatpush1.msra.mxu0 %v1165
  %1240 = vmatprep.subr.mxu0 0.0
  %1241 = vmatpush1.msra.mxu0 %v1166
  %1242 = vmatprep.subr.mxu0 0.0
  %1243 = vmatpush1.msra.mxu0 %v1167
  %1244 = vmatprep.subr.mxu0 0.0
  %1245 = vmatpush1.msra.mxu0 %v1168
  %1246 = vmatprep.subr.mxu0 0.0
  %1247 = vmatpush1.msra.mxu0 %v1169
  %1248 = vmatprep.subr.mxu0 0.0
  %1249 = vmatpush1.msra.mxu0 %v1170
  %1250 = vmatprep.subr.mxu0 0.0
  %1251 = vmatpush1.msra.mxu0 %v1171
  %1252 = vmatprep.subr.mxu0 0.0
  %1253 = vmatpush1.msra.mxu0 %v1172
  %1254 = vmatprep.subr.mxu0 0.0
  %1255 = vmatpush1.msra.mxu0 %v1173
  %1256 = vmatprep.subr.mxu0 0.0
  %1257 = vmatpush1.msra.mxu0 %v1174
  %1258 = vmatprep.subr.mxu0 0.0
  %1259 = vmatpush1.msra.mxu0 %v1175
  %1260 = vmatprep.subr.mxu0 0.0
  %1261 = vmatpush1.msra.mxu0 %v1176
  %1262 = vmatprep.subr.mxu0 0.0
  %1263 = vmatpush1.msra.mxu0 %v1177
  %1264 = vmatprep.subr.mxu0 0.0
  %1265 = vmatpush1.msra.mxu0 %v1178
  %1266 = vmatprep.subr.mxu0 0.0
  %1267 = vmatpush1.msra.mxu0 %v1179
  %1268 = vmatprep.subr.mxu0 0.0
  %1269 = vmatpush1.msra.mxu0 %v1180
  %1270 = vmatprep.subr.mxu0 0.0
  %1271 = vmatpush1.msra.mxu0 %v1181
  %1272 = vmatprep.subr.mxu0 0.0
  %1273 = vmatpush1.msra.mxu0 %v1182
  %1274 = vmatprep.subr.mxu0 0.0
  %1275 = vmatpush1.msra.mxu0 %v1183
  %1276 = vmatprep.subr.mxu0 0.0
  %1277 = vmatpush1.msra.mxu0 %v1184
  %1278 = vmatprep.subr.mxu0 0.0
  %1279 = vmatpush1.msra.mxu0 %v1185
  %1280 = vmatprep.subr.mxu0 0.0
  %1281 = vmatpush1.msra.mxu0 %v1186
  %1282 = vmatprep.subr.mxu0 0.0
  %1283 = vmatpush1.msra.mxu0 %v1187
  %1284 = vmatprep.subr.mxu0 0.0
  %1285 = vmatpush1.msra.mxu0 %v1188
  %1286 = vmatprep.subr.mxu0 0.0
  %1287 = vmatpush1.msra.mxu0 %v1189
  %1288 = vmatprep.subr.mxu0 0.0
  %1289 = vmatpush1.msra.mxu0 %v1190
  %1290 = vmatprep.subr.mxu0 0.0
  %1291 = vmatpush1.msra.mxu0 %v1191
  %1292 = vmatprep.subr.mxu0 0.0
  %1293 = vmatpush1.msra.mxu0 %v1192
  %1294 = vmatprep.subr.mxu0 0.0
  %1295 = vmatpush1.msra.mxu0 %v1193
  %1296 = vmatprep.subr.mxu0 0.0
  %1297 = vmatpush1.msra.mxu0 %v1194
  %1298 = vmatprep.mubr.f32.mxu0 %v1160
  %1299 = vmatmul.mubr.f32.gmra.mrb[0].mxu0 %v1159
  %v1300 = vpop.f32.mrb[0].mxu0
  %v1301 = vadd.f32 %v1232, %v1300
  %v1302 = vpop.f32.mrb[0].mxu0
  %1303 = vdwg.mxu0
  %1304 = vmatprep.subr.mxu0 0.0
  %1305 = vmatpush1.msra.mxu0 %v1195
  %1306 = vmatprep.subr.mxu0 0.0
  %1307 = vmatpush1.msra.mxu0 %v1196
  %1308 = vmatprep.subr.mxu0 0.0
  %1309 = vmatpush1.msra.mxu0 %v1197
  %1310 = vmatprep.subr.mxu0 0.0
  %1311 = vmatpush1.msra.mxu0 %v1198
  %1312 = vmatprep.subr.mxu0 0.0
  %1313 = vmatpush1.msra.mxu0 %v1199
  %1314 = vmatprep.subr.mxu0 0.0
  %1315 = vmatpush1.msra.mxu0 %v1200
  %1316 = vmatprep.subr.mxu0 0.0
  %1317 = vmatpush1.msra.mxu0 %v1201
  %1318 = vmatprep.subr.mxu0 0.0
  %1319 = vmatpush1.msra.mxu0 %v1202
  %1320 = vmatprep.subr.mxu0 0.0
  %1321 = vmatpush1.msra.mxu0 %v1203
  %1322 = vmatprep.subr.mxu0 0.0
  %1323 = vmatpush1.msra.mxu0 %v1204
  %1324 = vmatprep.subr.mxu0 0.0
  %1325 = vmatpush1.msra.mxu0 %v1205
  %1326 = vmatprep.subr.mxu0 0.0
  %1327 = vmatpush1.msra.mxu0 %v1206
  %1328 = vmatprep.subr.mxu0 0.0
  %1329 = vmatpush1.msra.mxu0 %v1207
  %1330 = vmatprep.subr.mxu0 0.0
  %1331 = vmatpush1.msra.mxu0 %v1208
  %1332 = vmatprep.subr.mxu0 0.0
  %1333 = vmatpush1.msra.mxu0 %v1209
  %1334 = vmatprep.subr.mxu0 0.0
  %1335 = vmatpush1.msra.mxu0 %v1210
  %1336 = vmatprep.subr.mxu0 0.0
  %1337 = vmatpush1.msra.mxu0 %v1211
  %1338 = vmatprep.subr.mxu0 0.0
  %1339 = vmatpush1.msra.mxu0 %v1212
  %1340 = vmatprep.subr.mxu0 0.0
  %1341 = vmatpush1.msra.mxu0 %v1213
  %1342 = vmatprep.subr.mxu0 0.0
  %1343 = vmatpush1.msra.mxu0 %v1214
  %1344 = vmatprep.subr.mxu0 0.0
  %1345 = vmatpush1.msra.mxu0 %v1215
  %1346 = vmatprep.subr.mxu0 0.0
  %1347 = vmatpush1.msra.mxu0 %v1216
  %1348 = vmatprep.subr.mxu0 0.0
  %1349 = vmatpush1.msra.mxu0 %v1217
  %1350 = vmatprep.subr.mxu0 0.0
  %1351 = vmatpush1.msra.mxu0 %v1218
  %1352 = vmatprep.subr.mxu0 0.0
  %1353 = vmatpush1.msra.mxu0 %v1219
  %1354 = vmatprep.subr.mxu0 0.0
  %1355 = vmatpush1.msra.mxu0 %v1220
  %1356 = vmatprep.subr.mxu0 0.0
  %1357 = vmatpush1.msra.mxu0 %v1221
  %1358 = vmatprep.subr.mxu0 0.0
  %1359 = vmatpush1.msra.mxu0 %v1222
  %1360 = vmatprep.subr.mxu0 0.0
  %1361 = vmatpush1.msra.mxu0 %v1223
  %1362 = vmatprep.subr.mxu0 0.0
  %1363 = vmatpush1.msra.mxu0 %v1224
  %1364 = vmatprep.subr.mxu0 0.0
  %1365 = vmatpush1.msra.mxu0 %v1225
  %1366 = vmatprep.subr.mxu0 0.0
  %1367 = vmatpush1.msra.mxu0 %v1226
  %1368 = vmatprep.mubr.f32.mxu0 %v1162
  %1369 = vmatmul.mubr.f32.gmra.mrb[0].mxu0 %v1161
  %v1370 = vpop.f32.mrb[0].mxu0
  %v1371 = vadd.f32 %v1301, %v1370
  %v1372 = vpop.f32.mrb[0].mxu0
  %1373 = vdwg.mxu0
  %vm1374 = vcmask 1024
  %1375 = vst.msk [vmem:[%s8] sm:$0x3] %vm1374, %v1371
  // Predicated region
  $region34: #{regressor_forward.1} parent=0 // pred_check
    _
  $region35: #{regressor_forward.1} parent=0 // pred_check_branch
    %1377 = sbr.rel (0) target = $region37
  $region36: #{regressor_forward.1} parent=0 // pred_region
    _
  $region37: #{regressor_forward.1} parent=0 // pred_fallthru
    _
  // Predicated region
  $region38: #{regressor_forward.1} parent=0 // pred_check
    _
  $region39: #{regressor_forward.1} parent=0 // pred_check_branch
    %1379 = sbr.rel (0) target = $region41
  $region40: #{regressor_forward.1} parent=0 // pred_region
    _
  $region41: #{regressor_forward.1} parent=0 // pred_fallthru
    _

</llo_original>
